<compile_context>
chip_gen: v7x
topology: tpu7x:2x2x1
jax: 0.10.0
libtpu: 0.0.40
codegen_flags: <defaults>
</compile_context>

<pallas_src>
import jax
import jax.numpy as jnp
from jax import lax
from jax.experimental import pallas as pl
from jax.experimental.pallas import tpu as pltpu


LANE = 128           # TPU lane width (M tiles are multiples of this)
SUBLANE_BF16 = 16    # bf16 sublane packing (pad C_out and K to this)


def _round_up(x, m):
    return (x + m - 1) // m * m


def _pick_m_tiling(m_dim, max_lane_tiles=8):
    """Pad M to a lane multiple and pick the M row-tile size.

    Prefers large tiles (up to max_lane_tiles*128 lanes; per-grid-step overhead
    is ~0.35us) while keeping >=2 grid steps when possible so v7x's two
    TensorCores both get work on the "parallel" axis.
    """
    m_pad = _round_up(m_dim, LANE)
    n_lane_tiles = m_pad // LANE
    if n_lane_tiles <= 1:
        return m_pad, m_pad                      # single tiny tile
    tiles_per_step = min(max_lane_tiles, max(1, n_lane_tiles // 2))
    tm = tiles_per_step * LANE
    m_pad = _round_up(m_pad, tm)                 # grid divides evenly
    return m_pad, tm


def _gemm_bias_relu_kernel(p_ref, w_ref, b_ref, o_ref):
    """One M-tile of the flipped im2col GEMM with fused bias + ReLU.

    p_ref: (k_pad, tm)     bf16 im2col patches (lanes = flattened N*Ho*Wo)
    w_ref: (c_pad, k_pad)  bf16 conv weight with BN scale folded in
    b_ref: (c_pad, 1)      f32  folded BN bias
    o_ref: (c_pad, tm)     bf16 output tile (channel-major, lane-dense in M)
    """
    acc = jnp.dot(w_ref[...], p_ref[...], preferred_element_type=jnp.float32)
    o_ref[...] = jnp.maximum(acc + b_ref[...], 0.0).astype(o_ref.dtype)


def conv_layer_forward(x_nchw, weight, gamma, beta, running_mean, running_var,
                       *, stride=1, padding=1, eps=1e-5):
    """ConvLayer forward: Conv2d(bias=False) -> BatchNorm2d(eval) -> ReLU."""
    n, c_in, h, w = x_nchw.shape
    c_out, c_in_w, kh, kw = weight.shape
    assert c_in == c_in_w
    h_out = (h + 2 * padding - kh) // stride + 1
    w_out = (w + 2 * padding - kw) // stride + 1

    k_dim = c_in * kh * kw
    m_dim = n * h_out * w_out

    # ---- Wrapper glue (layout plumbing; all FLOPs live in the kernel) -------
    # Channel-major im2col straight from NCHW (no NHWC transpose); cast to
    # bf16 BEFORE padding / tap extraction so the 9x-expanded stream is bf16.
    x_cm = jnp.transpose(x_nchw, (1, 0, 2, 3)).astype(jnp.bfloat16)
    x_pad = jnp.pad(x_cm, ((0, 0), (0, 0),
                           (padding, padding), (padding, padding)))
    taps = []
    for i in range(kh):
        for j in range(kw):
            taps.append(
                x_pad[:, :, i:i + (h_out - 1) * stride + 1:stride,
                            j:j + (w_out - 1) * stride + 1:stride])
    # (C_in, KH*KW, N, Ho, Wo) -> (K, M); K index = c*KH*KW + i*KW + j, which
    # matches weight.reshape(C_out, -1); M is batch-major (n, ho, wo).
    patches = jnp.stack(taps, axis=1).reshape(k_dim, m_dim)

    # Fold the (inference) BN scale into the conv weight; keep bias separate.
    scale = gamma / jnp.sqrt(running_var + eps)
    bias = beta - running_mean * scale
    w_flat = weight.reshape(c_out, k_dim).astype(jnp.float32) * scale[:, None]

    # TPU-friendly padding: C_out and K to the bf16 sublane pack (NOT to 128
    # lanes -- the kernel is DMA-bound), M to the lane tile.
    c_pad = _round_up(c_out, SUBLANE_BF16)
    k_pad = _round_up(k_dim, SUBLANE_BF16)
    m_pad, tm = _pick_m_tiling(m_dim)

    patches = jnp.pad(patches, ((0, k_pad - k_dim), (0, m_pad - m_dim)))
    w_mat = jnp.pad(w_flat, ((0, c_pad - c_out),
                             (0, k_pad - k_dim))).astype(jnp.bfloat16)
    bias_col = jnp.pad(bias.astype(jnp.float32),
                       (0, c_pad - c_out)).reshape(c_pad, 1)

    cost = pl.CostEstimate(
        flops=2 * m_pad * k_pad * c_pad,
        transcendentals=0,
        bytes_accessed=(k_pad * m_pad * 2      # bf16 patches
                        + c_pad * k_pad * 2    # bf16 weight
                        + c_pad * 4            # f32 bias
                        + c_pad * m_pad * 2))  # bf16 output

    out_flat = pl.pallas_call(
        _gemm_bias_relu_kernel,
        out_shape=jax.ShapeDtypeStruct((c_pad, m_pad), jnp.bfloat16),
        grid_spec=pltpu.PrefetchScalarGridSpec(
            num_scalar_prefetch=0,
            grid=(m_pad // tm,),
            in_specs=[
                pl.BlockSpec((k_pad, tm), lambda i: (0, i)),
                pl.BlockSpec((c_pad, k_pad), lambda i: (0, 0)),
                pl.BlockSpec((c_pad, 1), lambda i: (0, 0)),
            ],
            out_specs=pl.BlockSpec((c_pad, tm), lambda i: (0, i)),
        ),
        compiler_params=pltpu.CompilerParams(
            dimension_semantics=("parallel",),
            vmem_limit_bytes=32 * 1024 * 1024),
        cost_estimate=cost,
    )(patches, w_mat, bias_col)

    # Strip padding, restore PyTorch NCHW (true-size output only: C_out x M).
    out = out_flat[:c_out, :m_dim].reshape(c_out, n, h_out, w_out)
    return jnp.transpose(out, (1, 0, 2, 3)).astype(jnp.float32)


def _reference(x, weight, gamma, beta, mean, var, *, stride, padding, eps):
    y = lax.conv_general_dilated(
        x.astype(jnp.float32), weight.astype(jnp.float32),
        window_strides=(stride, stride),
        padding=[(padding, padding), (padding, padding)],
        dimension_numbers=("NCHW", "OIHW", "NCHW"))
    scale = gamma / jnp.sqrt(var + eps)
    bias = beta - mean * scale
    y = y * scale[None, :, None, None] + bias[None, :, None, None]
    return jnp.maximum(y, 0.0)


if __name__ == "__main__":
    # ConvLayer(w_in=4, w_out=8, kernel_size=3, stride=1, padding=1, 'relu')
    N, C_IN, H, W = 2, 4, 16, 16
    C_OUT, K, STRIDE, PAD = 8, 3, 1, 1
    EPS = 1e-5  # cfg.BN.EPS

    key = jax.random.PRNGKey(0)
    kx, kw_, kg, kb, km, kv = jax.random.split(key, 6)

    x = jax.random.normal(kx, (N, C_IN, H, W), dtype=jnp.float32)
    weight = 0.1 * jax.random.normal(kw_, (C_OUT, C_IN, K, K), jnp.float32)
    gamma = 1.0 + 0.1 * jax.random.normal(kg, (C_OUT,), jnp.float32)
    beta = 0.1 * jax.random.normal(kb, (C_OUT,), jnp.float32)
    running_mean = 0.1 * jax.random.normal(km, (C_OUT,), jnp.float32)
    running_var = jnp.abs(jax.random.normal(kv, (C_OUT,), jnp.float32)) + 0.5

    out = conv_layer_forward(x, weight, gamma, beta, running_mean, running_var,
                             stride=STRIDE, padding=PAD, eps=EPS)
    out = jax.block_until_ready(out)

    ref = _reference(x, weight, gamma, beta, running_mean, running_var,
                     stride=STRIDE, padding=PAD, eps=EPS)

    assert out.shape == (N, C_OUT, H, W), out.shape
    # bf16 MXU operands + bf16 output (f32 accumulation) -> loose tolerance.
    assert jnp.allclose(out, ref, rtol=5e-2, atol=5e-2), (
        float(jnp.max(jnp.abs(out - ref))))

    print("KERNEL_OK")
</pallas_src>

<mosaic_0001>
module attributes {stable_mosaic.version = 11 : i64} {
  func.func @_gemm_bias_relu_kernel(%arg0: i32, %arg1: memref<48x256xbf16, #tpu.memory_space<vmem>>, %arg2: memref<16x48xbf16, #tpu.memory_space<vmem>>, %arg3: memref<16x1xf32, #tpu.memory_space<vmem>>, %arg4: memref<16x256xbf16, #tpu.memory_space<vmem>>) attributes {dimension_semantics = [#tpu.dimension_semantics<parallel>], iteration_bounds = array<i64: 2>, scalar_prefetch = 0 : i64, scratch_operands = 0 : i64, tpu.core_type = #tpu.core_type<tc>, window_params = [{transform_indices = @transform_0, window_bounds = array<i64: 48, 256>}, {pipeline_mode = #tpu.pipeline_mode<synchronous>, transform_indices = @transform_1, window_bounds = array<i64: 16, 48>}, {pipeline_mode = #tpu.pipeline_mode<synchronous>, transform_indices = @transform_2, window_bounds = array<i64: 16, 1>}, {transform_indices = @transform_3, window_bounds = array<i64: 16, 256>}]} {
    %c0 = arith.constant 0 : index
    %c0_0 = arith.constant 0 : index
    %0 = vector.load %arg2[%c0, %c0_0] : memref<16x48xbf16, #tpu.memory_space<vmem>>, vector<16x48xbf16>
    %c0_1 = arith.constant 0 : index
    %c0_2 = arith.constant 0 : index
    %1 = vector.load %arg1[%c0_1, %c0_2] : memref<48x256xbf16, #tpu.memory_space<vmem>>, vector<48x256xbf16>
    %cst = arith.constant dense<0.000000e+00> : vector<16x256xf32>
    %2 = tpu.matmul %0, %1, %cst {dimension_numbers = #tpu.dot_dimension_numbers<[1], [0], [0], [1], [0, 0, 1, 1], [], []>} : vector<16x48xbf16>, vector<48x256xbf16>, vector<16x256xf32> -> vector<16x256xf32>
    %c0_3 = arith.constant 0 : index
    %c0_4 = arith.constant 0 : index
    %3 = vector.load %arg3[%c0_3, %c0_4] : memref<16x1xf32, #tpu.memory_space<vmem>>, vector<16x1xf32>
    %4 = vector.broadcast %3 : vector<16x1xf32> to vector<16x256xf32>
    %5 = arith.addf %2, %4 : vector<16x256xf32>
    %cst_5 = arith.constant 0.000000e+00 : f32
    %6 = vector.broadcast %cst_5 : f32 to vector<16x256xf32>
    %7 = arith.maximumf %5, %6 : vector<16x256xf32>
    %8 = arith.truncf %7 : vector<16x256xf32> to vector<16x256xbf16>
    %c0_6 = arith.constant 0 : index
    %c0_7 = arith.constant 0 : index
    %9 = vector.load %arg4[%c0_6, %c0_7] : memref<16x256xbf16, #tpu.memory_space<vmem>>, vector<16x256xbf16>
    tpu.vector_store %arg4[%c0_6, %c0_7], %8 {strides = array<i32>} : memref<16x256xbf16, #tpu.memory_space<vmem>>, vector<16x256xbf16>,
    return
  }
  func.func @transform_0(%arg0: i32) -> (i32, i32) {
    %c0_i32 = arith.constant 0 : i32
    %c0_i32_0 = arith.constant 0 : i32
    return %c0_i32, %arg0 : i32, i32
  }
  func.func @transform_1(%arg0: i32) -> (i32, i32) {
    %c0_i32 = arith.constant 0 : i32
    %c0_i32_0 = arith.constant 0 : i32
    %c0_i32_1 = arith.constant 0 : i32
    return %c0_i32, %c0_i32_0 : i32, i32
  }
  func.func @transform_2(%arg0: i32) -> (i32, i32) {
    %c0_i32 = arith.constant 0 : i32
    %c0_i32_0 = arith.constant 0 : i32
    %c0_i32_1 = arith.constant 0 : i32
    return %c0_i32, %c0_i32_0 : i32, i32
  }
  func.func @transform_3(%arg0: i32) -> (i32, i32) {
    %c0_i32 = arith.constant 0 : i32
    %c0_i32_0 = arith.constant 0 : i32
    return %c0_i32, %arg0 : i32, i32
  }
}

</mosaic_0001>

<llo_original>
// kernel: tpu_custom_call.1
$region0: #{tpu_custom_call.1}
  #allocation0 [shape = 'u32[]', space=smem, size = 0x4, offset = 0x4, fixed_abs, tag = 'smem constant byte address 0x4 - core index']
  #allocation1 [shape = 'u32[144,128]{1,0:T(1,128)}', space=vmem, size = 0x12000, scoped, tag = 'internal scratch']
  %s0 = inlined_call_operand.hbm [shape: bf16[48,512], index: 0, kind: input, shape index: {}]
  %s1 = inlined_call_operand.vmem [shape: bf16[16,48], index: 1, kind: input, shape index: {}]
  %s2 = inlined_call_operand.vmem [shape: f32[16,1], index: 2, kind: input, shape index: {}]
  %s3 = inlined_call_operand.hbm [shape: bf16[16,512], index: 3, kind: output, shape index: {}]
  %s4 = sld [smem:[#allocation0]]
  $region49: #{tpu_custom_call.1} parent=0
    _
  %s6 = ssub.s32 1, %s4
  %s7 = scalar_select 0, %s6, %s4
  $region1: #{tpu_custom_call.1} parent=0
    #allocation2 [shape = 'u8[49152]{0}', space=vmem, size = 0xc000, scoped, tag = 'input window, operand 0']
    #allocation3 [shape = 's32[2]{0}', space=sflag, size = 0x8, scoped, tag = 'scoped memory for tpu_custom_call.1']
    #allocation4 [shape = 's32[2]{0}', space=sflag, size = 0x8, scoped, tag = 'scoped memory for tpu_custom_call.1']
    #allocation5 [shape = 'u8[16384]{0}', space=vmem, size = 0x4000, scoped, tag = 'output window, operand 0']
    %8 = vsyncpa [#allocation3], 0
    %s9 = scalar_lea.sflag [#allocation3], 1
    %10 = vsyncpa %s9, 0
    %11 = vsyncpa [#allocation4], 0
    %s12 = scalar_lea.sflag [#allocation4], 1
    %13 = vsyncpa %s12, 0
    loop: start=0, step=1, limit=4
    $region2: #{tpu_custom_call.1} parent=1 // loop_pre_header
      _
    $region3: #{tpu_custom_call.1} parent=1 // loop_header
      %s15 = sphi 0, %s19
      %p16 = scmp.ge.s32.totalorder %s15, 4
      %s25 = sphi 0, %s27
      %s28 = sphi 0, %s25
      %s29 = sphi 0, %s28
      %s45 = sphi 0, %s29
      %s49 = sphi 0, %s49
      %s51 = sphi 0, %s49
      %s52 = sphi 0, %s51
      %s66 = sphi 0, %s52
      %s70 = sphi 0, %s70
      %s72 = sphi 0, %s70
      %s73 = sphi 0, %s72
      %s87 = sphi 0, %s73
      %s93 = sphi 0, %s95
      %s96 = sphi 0, %s93
      %s97 = sphi 0, %s96
      %s113 = sphi 0, %s97
    $region4: #{tpu_custom_call.1} parent=1 // loop_header_branch
      %18 = sbr.rel (%p16) target = $region8
    $region5: #{tpu_custom_call.1} parent=1 // loop_body
      %s20 = ssub.s32 %s15, 1
      %s21 = ssub.s32 %s15, 2
      %s22 = sadd.s32 %s15, 1
      %s23 = ssub.s32 %s15, %s22
      %p24 = scmp.eq.s32.totalorder %s23, 0
      %s26 = sadd.s32 %s25, 1
      %s27 = scalar_select %p24, %s25, %s26
      %p30 = pneg %p24
      %p31 = scmp.eq.s32.totalorder %s15, 1
      %p32 = por %p30, %p31
      %p33 = scmp.ne.s32.totalorder %s25, %s28
      %p34 = scmp.eq.s32.totalorder %s15, 0
      %p35 = por %p33, %p34
      %p36 = scmp.ne.s32.totalorder %s25, %s28
      %p37 = scmp.eq.s32.totalorder %s20, 1
      %p38 = por %p36, %p37
      %p39 = scmp.ne.s32.totalorder %s28, %s29
      %p40 = scmp.eq.s32.totalorder %s20, 0
      %p41 = por %p39, %p40
      %p42 = scmp.ne.s32.totalorder %s28, %s29
      %p43 = scmp.eq.s32.totalorder %s21, 1
      %p44 = por %p42, %p43
      %p46 = scmp.ne.s32.totalorder %s29, %s45
      %p47 = scmp.eq.s32.totalorder %s21, 0
      %p48 = por %p46, %p47
      %s50 = sadd.s32 %s49, 1
      %p53 = scmp.eq.s32.totalorder %s15, 1
      %p54 = scmp.ne.s32.totalorder %s49, %s51
      %p55 = scmp.eq.s32.totalorder %s15, 0
      %p56 = por %p54, %p55
      %p57 = scmp.ne.s32.totalorder %s49, %s51
      %p58 = scmp.eq.s32.totalorder %s20, 1
      %p59 = por %p57, %p58
      %p60 = scmp.ne.s32.totalorder %s51, %s52
      %p61 = scmp.eq.s32.totalorder %s20, 0
      %p62 = por %p60, %p61
      %p63 = scmp.ne.s32.totalorder %s51, %s52
      %p64 = scmp.eq.s32.totalorder %s21, 1
      %p65 = por %p63, %p64
      %p67 = scmp.ne.s32.totalorder %s52, %s66
      %p68 = scmp.eq.s32.totalorder %s21, 0
      %p69 = por %p67, %p68
      %s71 = sadd.s32 %s70, 1
      %p74 = scmp.eq.s32.totalorder %s15, 1
      %p75 = scmp.ne.s32.totalorder %s70, %s72
      %p76 = scmp.eq.s32.totalorder %s15, 0
      %p77 = por %p75, %p76
      %p78 = scmp.ne.s32.totalorder %s70, %s72
      %p79 = scmp.eq.s32.totalorder %s20, 1
      %p80 = por %p78, %p79
      %p81 = scmp.ne.s32.totalorder %s72, %s73
      %p82 = scmp.eq.s32.totalorder %s20, 0
      %p83 = por %p81, %p82
      %p84 = scmp.ne.s32.totalorder %s72, %s73
      %p85 = scmp.eq.s32.totalorder %s21, 1
      %p86 = por %p84, %p85
      %p88 = scmp.ne.s32.totalorder %s73, %s87
      %p89 = scmp.eq.s32.totalorder %s21, 0
      %p90 = por %p88, %p89
      %s91 = ssub.s32 %s15, %s22
      %p92 = scmp.eq.s32.totalorder %s91, 0
      %s94 = sadd.s32 %s93, 1
      %s95 = scalar_select %p92, %s93, %s94
      %p98 = pneg %p92
      %p99 = scmp.eq.s32.totalorder %s15, 1
      %p100 = por %p98, %p99
      %p101 = scmp.ne.s32.totalorder %s93, %s96
      %p102 = scmp.eq.s32.totalorder %s15, 0
      %p103 = por %p101, %p102
      %p104 = scmp.ne.s32.totalorder %s93, %s96
      %p105 = scmp.eq.s32.totalorder %s20, 1
      %p106 = por %p104, %p105
      %p107 = scmp.ne.s32.totalorder %s96, %s97
      %p108 = scmp.eq.s32.totalorder %s20, 0
      %p109 = por %p107, %p108
      %p110 = scmp.ne.s32.totalorder %s96, %s97
      %p111 = scmp.eq.s32.totalorder %s21, 1
      %p112 = por %p110, %p111
      %p114 = scmp.ne.s32.totalorder %s97, %s113
      %p115 = scmp.eq.s32.totalorder %s21, 0
      %p116 = por %p114, %p115
      %p117 = scmp.le.s32.totalorder 1, %s15
      %p118 = scmp.lt.s32.totalorder %s15, 3
      %p119 = pnand %p117, %p118
      %p120 = pneg %p119
      // Predicated region
      $region9: #{tpu_custom_call.1} parent=5 // pred_check
        _
      $region10: #{tpu_custom_call.1} parent=5 // pred_check_branch
        %122 = sbr.rel (%p119) target = $region12
      $region11: #{tpu_custom_call.1} parent=5 // pred_region
        %s123 = ssub.s32 %s15, 1
        // Predicated region
        $region13: #{tpu_custom_call.1} parent=11 // pred_check
          %p124 = pneg %p62
        $region14: #{tpu_custom_call.1} parent=11 // pred_check_branch
          %126 = sbr.rel (%p124) target = $region16
        $region15: #{tpu_custom_call.1} parent=11 // pred_region
          _
        $region16: #{tpu_custom_call.1} parent=11 // pred_fallthru
          _
        // Predicated region
        $region17: #{tpu_custom_call.1} parent=11 // pred_check
          %p127 = pneg %p83
        $region18: #{tpu_custom_call.1} parent=11 // pred_check_branch
          %129 = sbr.rel (%p127) target = $region20
        $region19: #{tpu_custom_call.1} parent=11 // pred_region
          _
        $region20: #{tpu_custom_call.1} parent=11 // pred_fallthru
          _
      $region12: #{tpu_custom_call.1} parent=5 // pred_fallthru
        _
      %p130 = scmp.lt.s32.totalorder %s15, 2
      // Predicated region
      $region21: #{tpu_custom_call.1} parent=5 // pred_check
        %p131 = pneg %p130
      $region22: #{tpu_custom_call.1} parent=5 // pred_check_branch
        %133 = sbr.rel (%p131) target = $region24
      $region23: #{tpu_custom_call.1} parent=5 // pred_region
        // Predicated region
        $region25: #{tpu_custom_call.1} parent=23 // pred_check
          %p134 = pneg %p35
        $region26: #{tpu_custom_call.1} parent=23 // pred_check_branch
          %136 = sbr.rel (%p134) target = $region28
        $region27: #{tpu_custom_call.1} parent=23 // pred_region
          %s137 = sand.u32 %s25, 1
          %s138 = scalar_lea.sflag [#allocation3], %s137
          %s139 = sand.u32 %s25, 1
          %s140 = smul.addr %s139, 48
          %s141 = scalar_lea.vmem [#allocation2], %s140
          %s142 = smul.u32 2, %s15
          %s144 = ssub.s32 768, 768
          %145 = vsyncadd %s138, %s144
          %s146 = smul.addr %s142, 64
          %s147 = scalar_lea.hbm %s0, %s146
          %s148 = sshll.u32 %s141, 4
          %s149 = int_to_ptr.vmem [resolvable:$true] %s148
          %154 = dma.hbm_to_vmem [thread:$0]  %s147, 768, %s149, %s138, 256, 128, 8
        $region28: #{tpu_custom_call.1} parent=23 // pred_fallthru
          _
      $region24: #{tpu_custom_call.1} parent=5 // pred_fallthru
        _
      %p155 = scmp.le.s32.totalorder 1, %s15
      %p156 = scmp.lt.s32.totalorder %s15, 3
      %p157 = pnand %p155, %p156
      %p158 = pneg %p157
      // Predicated region
      $region29: #{tpu_custom_call.1} parent=5 // pred_check
        _
      $region30: #{tpu_custom_call.1} parent=5 // pred_check_branch
        %160 = sbr.rel (%p157) target = $region32
      $region31: #{tpu_custom_call.1} parent=5 // pred_region
        %s161 = ssub.s32 %s15, 1
        %s162 = sand.u32 %s28, 1
        %s163 = scalar_lea.sflag [#allocation3], %s162
        %s164 = sand.u32 %s28, 1
        %s165 = smul.addr %s164, 48
        %s166 = scalar_lea.vmem [#allocation2], %s165
        // Predicated region
        $region33: #{tpu_custom_call.1} parent=31 // pred_check
          %p167 = pneg %p41
        $region34: #{tpu_custom_call.1} parent=31 // pred_check_branch
          %169 = sbr.rel (%p167) target = $region36
        $region35: #{tpu_custom_call.1} parent=31 // pred_region
          %170 = dma.done %s163, 768
        $region36: #{tpu_custom_call.1} parent=31 // pred_fallthru
          _
        %s171 = sand.u32 %s28, 1
        %s172 = scalar_lea.sflag [#allocation3], %s171
        %s173 = sand.u32 %s28, 1
        %s174 = smul.addr %s173, 48
        %s175 = scalar_lea.vmem [#allocation2], %s174
        %p176 = pneg %p41
        %p177 = pneg %p38
        %p178 = pneg %p62
        %p179 = pneg %p59
        %p180 = pneg %p83
        %p181 = pneg %p80
        %p182 = pneg %p109
        %p183 = pneg %p106
        %s184 = sand.u32 %s96, 1
        %s185 = scalar_lea.sflag [#allocation4], %s184
        %s186 = sand.u32 %s96, 1
        %s187 = smul.addr %s186, 16
        %s188 = scalar_lea.vmem [#allocation5], %s187
        %s189 = smul.u32 2, %s20
        %s190 = smul.u32 2, %s20
        %v192 = vld [vmem:[%s1] sm:$0xf]
        %v193 = vld [vmem:[%s1 + $0x4] sm:$0xf]
        %v194 = vld [vmem:[%s166] sm:$0xff]
        %v195 = vld [vmem:[%s166 + $0x8] sm:$0xff]
        %v196 = vld [vmem:[%s166 + $0x10] sm:$0xff]
        %v197 = vld [vmem:[%s166 + $0x18] sm:$0xff]
        %v198 = vld [vmem:[%s166 + $0x20] sm:$0xff]
        %v199 = vld [vmem:[%s166 + $0x28] sm:$0xff]
        %v200 = vld [vmem:[%s2] sm:$0xff]
        %v201 = vld [vmem:[%s2 + $0x8] sm:$0xff]
        %203 = vset.pattern.permute.xlu0 0
        %204 = vperm.xlu0 %203, %v200
        %v205 = vpop.permute.xlu0 %204
        %208 = vset.pattern.permute.xlu0 0
        %209 = vperm.xlu0 %208, %v201
        %v210 = vpop.permute.xlu0 %209
        %v214 = vunpack.c.l.b16 %v192
        %v215 = vunpack.c.l.b16 %v193
        %v216 = vpack.c.b16 %v215, %v214
        %v223 = vunpack.c.l.b16 %v194
        %v224 = vunpack.c.h.b16 %v194
        %v225 = vunpack.c.l.b16 %v195
        %v226 = vunpack.c.h.b16 %v195
        %v227 = vunpack.c.l.b16 %v196
        %v228 = vunpack.c.h.b16 %v196
        %v229 = vunpack.c.l.b16 %v197
        %v230 = vunpack.c.h.b16 %v197
        %v231 = vunpack.c.l.b16 %v198
        %v232 = vunpack.c.h.b16 %v198
        %v233 = vunpack.c.l.b16 %v199
        %v234 = vunpack.c.h.b16 %v199
        %v235 = vpack.c.b16 %v225, %v223
        %v236 = vpack.c.b16 %v226, %v224
        %v237 = vpack.c.b16 %v229, %v227
        %v238 = vpack.c.b16 %v230, %v228
        %v239 = vpack.c.b16 %v233, %v231
        %v240 = vpack.c.b16 %v234, %v232
        %vm247 = vcmask 392192
        %v249 = vsel %vm247, %v216, 0
        %251 = vmatprep.subr.bf16.mxu0 %v236
        %252 = vmatpush1.bf16.msra.mxu0 %v235
        %253 = vmatprep.subr.bf16.mxu0 %v238
        %254 = vmatpush1.bf16.msra.mxu0 %v237
        %255 = vmatprep.subr.bf16.mxu0 %v240
        %256 = vmatpush1.bf16.msra.mxu0 %v239
        %257 = vmatprep.subr.bf16.mxu0 0
        %258 = vmatpush1.bf16.msra.mxu0 0
        %259 = vmatprep.subr.bf16.mxu0 0
        %260 = vmatpush1.bf16.msra.mxu0 0
        %261 = vmatprep.subr.bf16.mxu0 0
        %262 = vmatpush1.bf16.msra.mxu0 0
        %263 = vmatprep.subr.bf16.mxu0 0
        %264 = vmatpush1.bf16.msra.mxu0 0
        %265 = vmatprep.subr.bf16.mxu0 0
        %266 = vmatpush1.bf16.msra.mxu0 0
        %267 = vmatprep.subr.bf16.mxu0 0
        %268 = vmatpush1.bf16.msra.mxu0 0
        %269 = vmatprep.subr.bf16.mxu0 0
        %270 = vmatpush1.bf16.msra.mxu0 0
        %271 = vmatprep.subr.bf16.mxu0 0
        %272 = vmatpush1.bf16.msra.mxu0 0
        %273 = vmatprep.subr.bf16.mxu0 0
        %274 = vmatpush1.bf16.msra.mxu0 0
        %275 = vmatprep.subr.bf16.mxu0 0
        %276 = vmatpush1.bf16.msra.mxu0 0
        %277 = vmatprep.subr.bf16.mxu0 0
        %278 = vmatpush1.bf16.msra.mxu0 0
        %279 = vmatprep.subr.bf16.mxu0 0
        %280 = vmatpush1.bf16.msra.mxu0 0
        %281 = vmatprep.subr.bf16.mxu0 0
        %282 = vmatpush1.bf16.msra.mxu0 0
        %283 = vmatprep.mubr.bf16.mxu0 0
        %284 = vmatmul.mubr.bf16.gmra.mrb[0].mxu0 %v249
        %v285 = vpop.f32.mrb[0].mxu0
        %v286 = vadd.f32 %v205, %v285
        %v287 = vpop.f32.mrb[0].mxu0
        %v288 = vadd.f32 %v205, %v287
        %v289 = vpop.f32.mrb[0].mxu0
        %v290 = vadd.f32 %v210, %v289
        %v291 = vpop.f32.mrb[0].mxu0
        %v292 = vadd.f32 %v210, %v291
        %293 = vdwg.mxu0
        %v294 = vmax.f32 %v286, 0.0
        %v295 = vmax.f32 %v288, 0.0
        %v296 = vmax.f32 %v290, 0.0
        %v297 = vmax.f32 %v292, 0.0
        %v298 = vpack.c.bf16 %v296, %v294
        %v299 = vpack.c.bf16 %v297, %v295
        %v302 = vunpack.c.l.b16 %v298
        %v303 = vunpack.c.l.b16 %v299
        %v304 = vunpack.c.h.b16 %v298
        %v305 = vunpack.c.h.b16 %v299
        %v306 = vpack.c.b16 %v303, %v302
        %v307 = vpack.c.b16 %v305, %v304
        %310 = vst [vmem:[%s188] sm:$0xff] %v306
        %311 = vst [vmem:[%s188 + $0x8] sm:$0xff] %v307
        %s312 = sand.u32 %s96, 1
        %s313 = scalar_lea.sflag [#allocation4], %s312
        %s314 = sand.u32 %s96, 1
        %s315 = smul.addr %s314, 16
        %s316 = scalar_lea.vmem [#allocation5], %s315
        // Predicated region
        $region37: #{tpu_custom_call.1} parent=31 // pred_check
          %p317 = pneg %p106
        $region38: #{tpu_custom_call.1} parent=31 // pred_check_branch
          %319 = sbr.rel (%p317) target = $region40
        $region39: #{tpu_custom_call.1} parent=31 // pred_region
          %s320 = smul.u32 2, %s20
          %s322 = ssub.s32 256, 256
          %323 = vsyncadd %s313, %s322
          %s324 = smul.addr %s320, 64
          %s325 = scalar_lea.hbm %s3, %s324
          %s326 = sshll.u32 %s316, 4
          %s327 = int_to_ptr.vmem [resolvable:$true] %s326
          %332 = dma.vmem_to_hbm [thread:$0]  %s327, 256, %s325, %s313, 128, 256, 8
        $region40: #{tpu_custom_call.1} parent=31 // pred_fallthru
          _
      $region32: #{tpu_custom_call.1} parent=5 // pred_fallthru
        _
      %p333 = scmp.le.s32.totalorder 2, %s15
      // Predicated region
      $region41: #{tpu_custom_call.1} parent=5 // pred_check
        %p334 = pneg %p333
      $region42: #{tpu_custom_call.1} parent=5 // pred_check_branch
        %336 = sbr.rel (%p334) target = $region44
      $region43: #{tpu_custom_call.1} parent=5 // pred_region
        %s337 = ssub.s32 %s15, 2
        // Predicated region
        $region45: #{tpu_custom_call.1} parent=43 // pred_check
          %p338 = pneg %p112
        $region46: #{tpu_custom_call.1} parent=43 // pred_check_branch
          %340 = sbr.rel (%p338) target = $region48
        $region47: #{tpu_custom_call.1} parent=43 // pred_region
          %s341 = sand.u32 %s97, 1
          %s342 = scalar_lea.sflag [#allocation4], %s341
          %s343 = sand.u32 %s97, 1
          %s344 = smul.addr %s343, 16
          %s345 = scalar_lea.vmem [#allocation5], %s344
          %346 = dma.done %s342, 256
        $region48: #{tpu_custom_call.1} parent=43 // pred_fallthru
          _
      $region44: #{tpu_custom_call.1} parent=5 // pred_fallthru
        _
    $region6: #{tpu_custom_call.1} parent=1 // loop_footer
      %s19 = sadd.s32 1, %s15
    $region7: #{tpu_custom_call.1} parent=1 // loop_footer_branch
      %14 = sbr.rel target = $region3
    $region8: #{tpu_custom_call.1} parent=1 // loop_exit
      _
    %347 = vsyncpa [#allocation3], 1
    %s348 = scalar_lea.sflag [#allocation3], 1
    %349 = vsyncpa %s348, 1
    %350 = vsyncpa [#allocation4], 1
    %s351 = scalar_lea.sflag [#allocation4], 1
    %352 = vsyncpa %s351, 1

</llo_original>
